<compile_context>
chip_gen: v7x
topology: tpu7x:2x2x1
jax: 0.10.0
libtpu: 0.0.40
codegen_flags: <defaults>
</compile_context>

<pallas_src>
import functools

import jax
import jax.numpy as jnp
from jax.experimental import pallas as pl
from jax.experimental.pallas import tpu as pltpu

# packed-parameter layout (flat f32[42] in SMEM)
_W1, _B1 = 0, 1            # fc1: 1 weight, 1 bias
_W2, _B2 = 2, 8            # fc2: 6 weights, 6 biases
_W34, _B34 = 14, 38        # fused fc3@fc4: 6*4 weights (row-major [k, o]), 4 biases
_NUM_PARAMS = 42

_MIN_BLOCK = 8 * 128                 # one (8,128) f32 tile of batch elements
_MAX_BLOCK = 8 * 32 * 1024           # ~256K elems/step: 1 MiB in + 4 MiB out per buffer
_VMEM_LIMIT_BYTES = 48 * 1024 * 1024 # explicit scoped-VMEM budget (safe on v5e..v7x)


def mlp_kernel(p_ref, x_ref, o_ref):
    """p_ref: f32[42] in SMEM. x_ref: [8, L_TILE]. o_ref: [4, 8, L_TILE]."""
    x = x_ref[...]                                                # [8, L_TILE]

    # fc1: Linear(1 -> 1) + ReLU  (scalar broadcast FMA on the whole slab)
    h1 = jnp.maximum(x * p_ref[_W1] + p_ref[_B1], 0.0)

    # fc2 (1 -> 6) + ReLU, then fused fc3@fc4 (6 -> 4, no activation between):
    # loop over the 6 hidden units and immediately accumulate into the 4
    # outputs so only ~6 block-sized temporaries are live at once.
    acc = [None, None, None, None]
    for k in range(6):
        h2k = jnp.maximum(h1 * p_ref[_W2 + k] + p_ref[_B2 + k], 0.0)
        for o in range(4):
            t = h2k * p_ref[_W34 + 4 * k + o]
            acc[o] = (t + p_ref[_B34 + o]) if k == 0 else (acc[o] + t)

    # Single dense full-block store (all 8 sublanes x L_TILE lanes per slab).
    o_ref[...] = jnp.stack(acc, axis=0)                           # [4, 8, L_TILE]


def pack_params(params):
    """Fold fc3/fc4 and flatten all scalars into one f32[42] array (SMEM operand)."""
    w34 = params["w3"] @ params["w4"]                             # [6, 4]
    b34 = params["b3"] @ params["w4"] + params["b4"]              # [1, 4]
    flat = jnp.concatenate([
        params["w1"].reshape(-1),   # 1
        params["b1"].reshape(-1),   # 1
        params["w2"].reshape(-1),   # 6   (w2[0, o] -> index _W2 + o)
        params["b2"].reshape(-1),   # 6
        w34.reshape(-1),            # 24  (w34[k, o] -> index _W34 + 4k + o)
        b34.reshape(-1),            # 4
    ])
    return flat.astype(jnp.float32)


def _cdiv(a, b):
    return -(-a // b)


def _round_up(n, m):
    return _cdiv(n, m) * m


def _choose_block(batch):
    """Batch elements per grid step (multiple of 8*128)."""
    b0 = _round_up(max(batch, 1), _MIN_BLOCK)
    # Prefer >= 8 grid steps (pipelining + megacore / v7x 2-TC sharding), but
    # never below _MIN_BLOCK per step and cap per-step size at ~_MAX_BLOCK so
    # double-buffered I/O + temporaries stay inside the VMEM budget.
    steps = max(_cdiv(b0, _MAX_BLOCK), min(8, b0 // _MIN_BLOCK))
    return _round_up(_cdiv(b0, steps), _MIN_BLOCK)


@jax.jit
def _pallas_forward(x, params):
    """x: [B, 1] float32 (PyTorch layout). Returns [B, 4]."""
    B = x.shape[0]
    flat = pack_params(params)

    block = _choose_block(B)            # batch elements per grid step
    b_pad = _round_up(B, block)
    n_steps = b_pad // block
    l_tile = block // 8                 # lanes per step (multiple of 128)

    # Batch-on-(sublanes x lanes) slab.  Aligned B -> pure (free) reshape;
    # otherwise only the ragged tail is padded.
    xflat = x.reshape(B).astype(jnp.float32)
    if b_pad != B:
        xflat = jnp.concatenate([xflat, jnp.zeros((b_pad - B,), jnp.float32)])
    x_slab = xflat.reshape(8, b_pad // 8)

    cost = pl.CostEstimate(
        flops=2 * b_pad * 31,                       # 2 + 12 + 48 flops / element
        transcendentals=0,
        bytes_accessed=4 * (5 * b_pad + _NUM_PARAMS),
    )

    out = pl.pallas_call(
        mlp_kernel,
        out_shape=jax.ShapeDtypeStruct((4, 8, b_pad // 8), jnp.float32),
        grid_spec=pltpu.PrefetchScalarGridSpec(
            num_scalar_prefetch=0,
            grid=(n_steps,),
            in_specs=[
                pl.BlockSpec(memory_space=pltpu.MemorySpace.SMEM),   # packed params
                pl.BlockSpec((8, l_tile), lambda i: (0, i)),         # x slab
            ],
            out_specs=pl.BlockSpec((4, 8, l_tile), lambda i: (0, 0, i)),
        ),
        compiler_params=pltpu.CompilerParams(
            dimension_semantics=("parallel",),
            vmem_limit_bytes=_VMEM_LIMIT_BYTES,
        ),
        cost_estimate=cost,
    )(flat, x_slab)

    out2 = out.reshape(4, b_pad)        # free (contiguous) reshape
    if b_pad != B:
        out2 = out2[:, :B]
    return out2.T                       # single transpose back to the module's [B, 4]


def reference_forward(x, params):
    h = jnp.maximum(x @ params["w1"] + params["b1"], 0.0)
    h = jnp.maximum(h @ params["w2"] + params["b2"], 0.0)
    h = h @ params["w3"] + params["b3"]
    h = h @ params["w4"] + params["b4"]
    return h


_reference_jit = jax.jit(reference_forward)


def simple_sd_model_forward(x, params, *, min_pallas_batch=4096):
    """Forward pass matching the PyTorch module: x [B, 1] -> [B, 4]."""
    if x.shape[0] < min_pallas_batch:
        # Tiny batches are launch/pad/transpose-latency bound; let XLA fuse the
        # four scalar-width linears instead of paying the Pallas path overhead.
        return _reference_jit(x, params)
    return _pallas_forward(x, params)


def init_params(key):
    """Deterministic init mimicking nn.Linear's uniform(+-1/sqrt(fan_in)).
    Weights stored as [in_features, out_features] (transposed vs. PyTorch)."""
    dims = [(1, 1), (1, 6), (6, 7), (7, 4)]
    params = {}
    keys = jax.random.split(key, 2 * len(dims))
    for i, (fan_in, fan_out) in enumerate(dims):
        bound = 1.0 / jnp.sqrt(jnp.float32(fan_in))
        w = jax.random.uniform(keys[2 * i], (fan_in, fan_out),
                               minval=-bound, maxval=bound, dtype=jnp.float32)
        b = jax.random.uniform(keys[2 * i + 1], (1, fan_out),
                               minval=-bound, maxval=bound, dtype=jnp.float32)
        params[f"w{i + 1}"] = w
        params[f"b{i + 1}"] = b
    return params


if __name__ == "__main__":
    key = jax.random.PRNGKey(0)
    pkey, k1, k2 = jax.random.split(key, 3)
    params = init_params(pkey)

    # 1) Small batch, forced through the Pallas kernel (single grid step).
    x_small = jax.random.normal(k1, (8, 1), dtype=jnp.float32)
    out_small = jax.block_until_ready(_pallas_forward(x_small, params))
    ref_small = reference_forward(x_small, params)
    assert out_small.shape == (8, 4), out_small.shape
    assert jnp.allclose(out_small, ref_small, atol=1e-5, rtol=1e-5)

    # 2) Ragged batch -> padded tail + multi-step "parallel" grid.
    x_rag = jax.random.normal(k2, (2500, 1), dtype=jnp.float32)
    out_rag = jax.block_until_ready(
        simple_sd_model_forward(x_rag, params, min_pallas_batch=0))
    ref_rag = reference_forward(x_rag, params)
    assert out_rag.shape == (2500, 4), out_rag.shape
    assert jnp.allclose(out_rag, ref_rag, atol=1e-5, rtol=1e-5)

    # 3) Default dispatcher path for tiny batches (XLA-fused, no kernel launch).
    out_bypass = jax.block_until_ready(simple_sd_model_forward(x_small, params))
    assert jnp.allclose(out_bypass, ref_small, atol=1e-5, rtol=1e-5)

    print("KERNEL_OK")
</pallas_src>

<mosaic_0001>
module attributes {stable_mosaic.version = 11 : i64} {
  func.func @mlp_kernel(%arg0: i32, %arg1: memref<42xf32, #tpu.memory_space<smem>>, %arg2: memref<8x128xf32, #tpu.memory_space<vmem>>, %arg3: memref<4x8x128xf32, #tpu.memory_space<vmem>>) attributes {dimension_semantics = [#tpu.dimension_semantics<parallel>], iteration_bounds = array<i64: 1>, scalar_prefetch = 0 : i64, scratch_operands = 0 : i64, tpu.core_type = #tpu.core_type<tc>, window_params = [{transform_indices = @transform_0, window_bounds = array<i64: 42>}, {transform_indices = @transform_1, window_bounds = array<i64: 8, 128>}, {transform_indices = @transform_2, window_bounds = array<i64: 4, 8, 128>}]} {
    %c0 = arith.constant 0 : index
    %c0_0 = arith.constant 0 : index
    %0 = vector.load %arg2[%c0, %c0_0] : memref<8x128xf32, #tpu.memory_space<vmem>>, vector<8x128xf32>
    %c0_1 = arith.constant 0 : index
    %1 = memref.load %arg1[%c0_1] : memref<42xf32, #tpu.memory_space<smem>>
    %2 = vector.broadcast %1 : f32 to vector<8x128xf32>
    %3 = arith.mulf %0, %2 : vector<8x128xf32>
    %c1 = arith.constant 1 : index
    %4 = memref.load %arg1[%c1] : memref<42xf32, #tpu.memory_space<smem>>
    %5 = vector.broadcast %4 : f32 to vector<8x128xf32>
    %6 = arith.addf %3, %5 : vector<8x128xf32>
    %cst = arith.constant 0.000000e+00 : f32
    %7 = vector.broadcast %cst : f32 to vector<8x128xf32>
    %8 = arith.maximumf %6, %7 : vector<8x128xf32>
    %c2 = arith.constant 2 : index
    %9 = memref.load %arg1[%c2] : memref<42xf32, #tpu.memory_space<smem>>
    %10 = vector.broadcast %9 : f32 to vector<8x128xf32>
    %11 = arith.mulf %8, %10 : vector<8x128xf32>
    %c8 = arith.constant 8 : index
    %12 = memref.load %arg1[%c8] : memref<42xf32, #tpu.memory_space<smem>>
    %13 = vector.broadcast %12 : f32 to vector<8x128xf32>
    %14 = arith.addf %11, %13 : vector<8x128xf32>
    %cst_2 = arith.constant 0.000000e+00 : f32
    %15 = vector.broadcast %cst_2 : f32 to vector<8x128xf32>
    %16 = arith.maximumf %14, %15 : vector<8x128xf32>
    %c14 = arith.constant 14 : index
    %17 = memref.load %arg1[%c14] : memref<42xf32, #tpu.memory_space<smem>>
    %18 = vector.broadcast %17 : f32 to vector<8x128xf32>
    %19 = arith.mulf %16, %18 : vector<8x128xf32>
    %c38 = arith.constant 38 : index
    %20 = memref.load %arg1[%c38] : memref<42xf32, #tpu.memory_space<smem>>
    %21 = vector.broadcast %20 : f32 to vector<8x128xf32>
    %22 = arith.addf %19, %21 : vector<8x128xf32>
    %c15 = arith.constant 15 : index
    %23 = memref.load %arg1[%c15] : memref<42xf32, #tpu.memory_space<smem>>
    %24 = vector.broadcast %23 : f32 to vector<8x128xf32>
    %25 = arith.mulf %16, %24 : vector<8x128xf32>
    %c39 = arith.constant 39 : index
    %26 = memref.load %arg1[%c39] : memref<42xf32, #tpu.memory_space<smem>>
    %27 = vector.broadcast %26 : f32 to vector<8x128xf32>
    %28 = arith.addf %25, %27 : vector<8x128xf32>
    %c16 = arith.constant 16 : index
    %29 = memref.load %arg1[%c16] : memref<42xf32, #tpu.memory_space<smem>>
    %30 = vector.broadcast %29 : f32 to vector<8x128xf32>
    %31 = arith.mulf %16, %30 : vector<8x128xf32>
    %c40 = arith.constant 40 : index
    %32 = memref.load %arg1[%c40] : memref<42xf32, #tpu.memory_space<smem>>
    %33 = vector.broadcast %32 : f32 to vector<8x128xf32>
    %34 = arith.addf %31, %33 : vector<8x128xf32>
    %c17 = arith.constant 17 : index
    %35 = memref.load %arg1[%c17] : memref<42xf32, #tpu.memory_space<smem>>
    %36 = vector.broadcast %35 : f32 to vector<8x128xf32>
    %37 = arith.mulf %16, %36 : vector<8x128xf32>
    %c41 = arith.constant 41 : index
    %38 = memref.load %arg1[%c41] : memref<42xf32, #tpu.memory_space<smem>>
    %39 = vector.broadcast %38 : f32 to vector<8x128xf32>
    %40 = arith.addf %37, %39 : vector<8x128xf32>
    %c3 = arith.constant 3 : index
    %41 = memref.load %arg1[%c3] : memref<42xf32, #tpu.memory_space<smem>>
    %42 = vector.broadcast %41 : f32 to vector<8x128xf32>
    %43 = arith.mulf %8, %42 : vector<8x128xf32>
    %c9 = arith.constant 9 : index
    %44 = memref.load %arg1[%c9] : memref<42xf32, #tpu.memory_space<smem>>
    %45 = vector.broadcast %44 : f32 to vector<8x128xf32>
    %46 = arith.addf %43, %45 : vector<8x128xf32>
    %cst_3 = arith.constant 0.000000e+00 : f32
    %47 = vector.broadcast %cst_3 : f32 to vector<8x128xf32>
    %48 = arith.maximumf %46, %47 : vector<8x128xf32>
    %c18 = arith.constant 18 : index
    %49 = memref.load %arg1[%c18] : memref<42xf32, #tpu.memory_space<smem>>
    %50 = vector.broadcast %49 : f32 to vector<8x128xf32>
    %51 = arith.mulf %48, %50 : vector<8x128xf32>
    %52 = arith.addf %22, %51 : vector<8x128xf32>
    %c19 = arith.constant 19 : index
    %53 = memref.load %arg1[%c19] : memref<42xf32, #tpu.memory_space<smem>>
    %54 = vector.broadcast %53 : f32 to vector<8x128xf32>
    %55 = arith.mulf %48, %54 : vector<8x128xf32>
    %56 = arith.addf %28, %55 : vector<8x128xf32>
    %c20 = arith.constant 20 : index
    %57 = memref.load %arg1[%c20] : memref<42xf32, #tpu.memory_space<smem>>
    %58 = vector.broadcast %57 : f32 to vector<8x128xf32>
    %59 = arith.mulf %48, %58 : vector<8x128xf32>
    %60 = arith.addf %34, %59 : vector<8x128xf32>
    %c21 = arith.constant 21 : index
    %61 = memref.load %arg1[%c21] : memref<42xf32, #tpu.memory_space<smem>>
    %62 = vector.broadcast %61 : f32 to vector<8x128xf32>
    %63 = arith.mulf %48, %62 : vector<8x128xf32>
    %64 = arith.addf %40, %63 : vector<8x128xf32>
    %c4 = arith.constant 4 : index
    %65 = memref.load %arg1[%c4] : memref<42xf32, #tpu.memory_space<smem>>
    %66 = vector.broadcast %65 : f32 to vector<8x128xf32>
    %67 = arith.mulf %8, %66 : vector<8x128xf32>
    %c10 = arith.constant 10 : index
    %68 = memref.load %arg1[%c10] : memref<42xf32, #tpu.memory_space<smem>>
    %69 = vector.broadcast %68 : f32 to vector<8x128xf32>
    %70 = arith.addf %67, %69 : vector<8x128xf32>
    %cst_4 = arith.constant 0.000000e+00 : f32
    %71 = vector.broadcast %cst_4 : f32 to vector<8x128xf32>
    %72 = arith.maximumf %70, %71 : vector<8x128xf32>
    %c22 = arith.constant 22 : index
    %73 = memref.load %arg1[%c22] : memref<42xf32, #tpu.memory_space<smem>>
    %74 = vector.broadcast %73 : f32 to vector<8x128xf32>
    %75 = arith.mulf %72, %74 : vector<8x128xf32>
    %76 = arith.addf %52, %75 : vector<8x128xf32>
    %c23 = arith.constant 23 : index
    %77 = memref.load %arg1[%c23] : memref<42xf32, #tpu.memory_space<smem>>
    %78 = vector.broadcast %77 : f32 to vector<8x128xf32>
    %79 = arith.mulf %72, %78 : vector<8x128xf32>
    %80 = arith.addf %56, %79 : vector<8x128xf32>
    %c24 = arith.constant 24 : index
    %81 = memref.load %arg1[%c24] : memref<42xf32, #tpu.memory_space<smem>>
    %82 = vector.broadcast %81 : f32 to vector<8x128xf32>
    %83 = arith.mulf %72, %82 : vector<8x128xf32>
    %84 = arith.addf %60, %83 : vector<8x128xf32>
    %c25 = arith.constant 25 : index
    %85 = memref.load %arg1[%c25] : memref<42xf32, #tpu.memory_space<smem>>
    %86 = vector.broadcast %85 : f32 to vector<8x128xf32>
    %87 = arith.mulf %72, %86 : vector<8x128xf32>
    %88 = arith.addf %64, %87 : vector<8x128xf32>
    %c5 = arith.constant 5 : index
    %89 = memref.load %arg1[%c5] : memref<42xf32, #tpu.memory_space<smem>>
    %90 = vector.broadcast %89 : f32 to vector<8x128xf32>
    %91 = arith.mulf %8, %90 : vector<8x128xf32>
    %c11 = arith.constant 11 : index
    %92 = memref.load %arg1[%c11] : memref<42xf32, #tpu.memory_space<smem>>
    %93 = vector.broadcast %92 : f32 to vector<8x128xf32>
    %94 = arith.addf %91, %93 : vector<8x128xf32>
    %cst_5 = arith.constant 0.000000e+00 : f32
    %95 = vector.broadcast %cst_5 : f32 to vector<8x128xf32>
    %96 = arith.maximumf %94, %95 : vector<8x128xf32>
    %c26 = arith.constant 26 : index
    %97 = memref.load %arg1[%c26] : memref<42xf32, #tpu.memory_space<smem>>
    %98 = vector.broadcast %97 : f32 to vector<8x128xf32>
    %99 = arith.mulf %96, %98 : vector<8x128xf32>
    %100 = arith.addf %76, %99 : vector<8x128xf32>
    %c27 = arith.constant 27 : index
    %101 = memref.load %arg1[%c27] : memref<42xf32, #tpu.memory_space<smem>>
    %102 = vector.broadcast %101 : f32 to vector<8x128xf32>
    %103 = arith.mulf %96, %102 : vector<8x128xf32>
    %104 = arith.addf %80, %103 : vector<8x128xf32>
    %c28 = arith.constant 28 : index
    %105 = memref.load %arg1[%c28] : memref<42xf32, #tpu.memory_space<smem>>
    %106 = vector.broadcast %105 : f32 to vector<8x128xf32>
    %107 = arith.mulf %96, %106 : vector<8x128xf32>
    %108 = arith.addf %84, %107 : vector<8x128xf32>
    %c29 = arith.constant 29 : index
    %109 = memref.load %arg1[%c29] : memref<42xf32, #tpu.memory_space<smem>>
    %110 = vector.broadcast %109 : f32 to vector<8x128xf32>
    %111 = arith.mulf %96, %110 : vector<8x128xf32>
    %112 = arith.addf %88, %111 : vector<8x128xf32>
    %c6 = arith.constant 6 : index
    %113 = memref.load %arg1[%c6] : memref<42xf32, #tpu.memory_space<smem>>
    %114 = vector.broadcast %113 : f32 to vector<8x128xf32>
    %115 = arith.mulf %8, %114 : vector<8x128xf32>
    %c12 = arith.constant 12 : index
    %116 = memref.load %arg1[%c12] : memref<42xf32, #tpu.memory_space<smem>>
    %117 = vector.broadcast %116 : f32 to vector<8x128xf32>
    %118 = arith.addf %115, %117 : vector<8x128xf32>
    %cst_6 = arith.constant 0.000000e+00 : f32
    %119 = vector.broadcast %cst_6 : f32 to vector<8x128xf32>
    %120 = arith.maximumf %118, %119 : vector<8x128xf32>
    %c30 = arith.constant 30 : index
    %121 = memref.load %arg1[%c30] : memref<42xf32, #tpu.memory_space<smem>>
    %122 = vector.broadcast %121 : f32 to vector<8x128xf32>
    %123 = arith.mulf %120, %122 : vector<8x128xf32>
    %124 = arith.addf %100, %123 : vector<8x128xf32>
    %c31 = arith.constant 31 : index
    %125 = memref.load %arg1[%c31] : memref<42xf32, #tpu.memory_space<smem>>
    %126 = vector.broadcast %125 : f32 to vector<8x128xf32>
    %127 = arith.mulf %120, %126 : vector<8x128xf32>
    %128 = arith.addf %104, %127 : vector<8x128xf32>
    %c32 = arith.constant 32 : index
    %129 = memref.load %arg1[%c32] : memref<42xf32, #tpu.memory_space<smem>>
    %130 = vector.broadcast %129 : f32 to vector<8x128xf32>
    %131 = arith.mulf %120, %130 : vector<8x128xf32>
    %132 = arith.addf %108, %131 : vector<8x128xf32>
    %c33 = arith.constant 33 : index
    %133 = memref.load %arg1[%c33] : memref<42xf32, #tpu.memory_space<smem>>
    %134 = vector.broadcast %133 : f32 to vector<8x128xf32>
    %135 = arith.mulf %120, %134 : vector<8x128xf32>
    %136 = arith.addf %112, %135 : vector<8x128xf32>
    %c7 = arith.constant 7 : index
    %137 = memref.load %arg1[%c7] : memref<42xf32, #tpu.memory_space<smem>>
    %138 = vector.broadcast %137 : f32 to vector<8x128xf32>
    %139 = arith.mulf %8, %138 : vector<8x128xf32>
    %c13 = arith.constant 13 : index
    %140 = memref.load %arg1[%c13] : memref<42xf32, #tpu.memory_space<smem>>
    %141 = vector.broadcast %140 : f32 to vector<8x128xf32>
    %142 = arith.addf %139, %141 : vector<8x128xf32>
    %cst_7 = arith.constant 0.000000e+00 : f32
    %143 = vector.broadcast %cst_7 : f32 to vector<8x128xf32>
    %144 = arith.maximumf %142, %143 : vector<8x128xf32>
    %c34 = arith.constant 34 : index
    %145 = memref.load %arg1[%c34] : memref<42xf32, #tpu.memory_space<smem>>
    %146 = vector.broadcast %145 : f32 to vector<8x128xf32>
    %147 = arith.mulf %144, %146 : vector<8x128xf32>
    %148 = arith.addf %124, %147 : vector<8x128xf32>
    %c35 = arith.constant 35 : index
    %149 = memref.load %arg1[%c35] : memref<42xf32, #tpu.memory_space<smem>>
    %150 = vector.broadcast %149 : f32 to vector<8x128xf32>
    %151 = arith.mulf %144, %150 : vector<8x128xf32>
    %152 = arith.addf %128, %151 : vector<8x128xf32>
    %c36 = arith.constant 36 : index
    %153 = memref.load %arg1[%c36] : memref<42xf32, #tpu.memory_space<smem>>
    %154 = vector.broadcast %153 : f32 to vector<8x128xf32>
    %155 = arith.mulf %144, %154 : vector<8x128xf32>
    %156 = arith.addf %132, %155 : vector<8x128xf32>
    %c37 = arith.constant 37 : index
    %157 = memref.load %arg1[%c37] : memref<42xf32, #tpu.memory_space<smem>>
    %158 = vector.broadcast %157 : f32 to vector<8x128xf32>
    %159 = arith.mulf %144, %158 : vector<8x128xf32>
    %160 = arith.addf %136, %159 : vector<8x128xf32>
    %161 = vector.shape_cast %148 : vector<8x128xf32> to vector<1x8x128xf32>
    %162 = vector.shape_cast %152 : vector<8x128xf32> to vector<1x8x128xf32>
    %163 = vector.shape_cast %156 : vector<8x128xf32> to vector<1x8x128xf32>
    %164 = vector.shape_cast %160 : vector<8x128xf32> to vector<1x8x128xf32>
    %165 = tpu.concatenate %161, %162, %163, %164 in 0 : vector<1x8x128xf32>, vector<1x8x128xf32>, vector<1x8x128xf32>, vector<1x8x128xf32> -> vector<4x8x128xf32>
    %c0_8 = arith.constant 0 : index
    %c0_9 = arith.constant 0 : index
    %c0_10 = arith.constant 0 : index
    %166 = vector.load %arg3[%c0_8, %c0_9, %c0_10] : memref<4x8x128xf32, #tpu.memory_space<vmem>>, vector<4x8x128xf32>
    tpu.vector_store %arg3[%c0_8, %c0_9, %c0_10], %165 {strides = array<i32>} : memref<4x8x128xf32, #tpu.memory_space<vmem>>, vector<4x8x128xf32>,
    return
  }
  func.func @transform_0(%arg0: i32) -> i32 {
    %c0_i32 = arith.constant 0 : i32
    %c0_i32_0 = arith.constant 0 : i32
    return %c0_i32 : i32
  }
  func.func @transform_1(%arg0: i32) -> (i32, i32) {
    %c0_i32 = arith.constant 0 : i32
    %c0_i32_0 = arith.constant 0 : i32
    return %c0_i32, %arg0 : i32, i32
  }
  func.func @transform_2(%arg0: i32) -> (i32, i32, i32) {
    %c0_i32 = arith.constant 0 : i32
    %c0_i32_0 = arith.constant 0 : i32
    %c0_i32_1 = arith.constant 0 : i32
    return %c0_i32, %c0_i32_0, %arg0 : i32, i32, i32
  }
}

</mosaic_0001>

<llo_original>
// kernel: _pallas_forward.1
$region0: #{_pallas_forward.1}
  #allocation0 [shape = 'u32[]', space=smem, size = 0x4, offset = 0x4, fixed_abs, tag = 'smem constant byte address 0x4 - core index']
  #allocation1 [shape = 'u32[144,128]{1,0:T(1,128)}', space=vmem, size = 0x12000, scoped, tag = 'internal scratch']
  %s0 = inlined_call_operand.vmem [shape: f32[42], index: 0, kind: input, shape index: {}]
  %s1 = inlined_call_operand.vmem [shape: f32[8,128], index: 1, kind: input, shape index: {}]
  %s2 = inlined_call_operand.vmem [shape: f32[4,8,128], index: 2, kind: output, shape index: {}]
  %s3 = sld [smem:[#allocation0]]
  $region22: #{_pallas_forward.1} parent=0
    _
  %s5 = ssub.s32 1, %s3
  %s6 = scalar_select 0, %s5, %s3
  $region1: #{_pallas_forward.1} parent=0
    #allocation2 [shape = 'u8[512]{0}', space=smem, size = 0x200, scoped, tag = 'input window, operand 0, single buffered']
    #allocation3 [shape = 's32[1]{0}', space=sflag, size = 0x4, scoped, tag = 'scoped memory for _pallas_forward.1']
    %7 = vsyncpa [#allocation3], 0
    // Predicated region
    $region2: #{_pallas_forward.1} parent=1 // pred_check
      _
    $region3: #{_pallas_forward.1} parent=1 // pred_check_branch
      %9 = sbr.rel (0) target = $region5
    $region4: #{_pallas_forward.1} parent=1 // pred_region
      %s11 = ssub.s32 16, 16
      %12 = vsyncadd [#allocation3], %s11
      %s14 = sshll.u32 %s0, 4
      %s15 = int_to_ptr.vmem [resolvable:$true] %s14
      %17 = dma.vmem_to_smem %s15, 16, [#allocation2], [#allocation3]
    $region5: #{_pallas_forward.1} parent=1 // pred_fallthru
      _
    // Predicated region
    $region6: #{_pallas_forward.1} parent=1 // pred_check
      _
    $region7: #{_pallas_forward.1} parent=1 // pred_check_branch
      %19 = sbr.rel (0) target = $region9
    $region8: #{_pallas_forward.1} parent=1 // pred_region
      _
    $region9: #{_pallas_forward.1} parent=1 // pred_fallthru
      _
    // Predicated region
    $region10: #{_pallas_forward.1} parent=1 // pred_check
      _
    $region11: #{_pallas_forward.1} parent=1 // pred_check_branch
      %21 = sbr.rel (0) target = $region13
    $region12: #{_pallas_forward.1} parent=1 // pred_region
      %22 = dma.done [#allocation3], 16
    $region13: #{_pallas_forward.1} parent=1 // pred_fallthru
      _
    %23 = sfence
    %v24 = vld [vmem:[%s1] sm:$0xff]
    %s25 = sld [smem:[#allocation2]]
    %v26 = vstv %s25
    %v27 = vmul.f32 %v24, %v26
    %s28 = sld [smem:[#allocation2 + $0x1]]
    %v29 = vstv %s28
    %v30 = vadd.f32 %v27, %v29
    %v31 = vmax.f32 %v30, 0.0
    %s32 = sld [smem:[#allocation2 + $0x2]]
    %v33 = vstv %s32
    %v34 = vmul.f32 %v31, %v33
    %s35 = sld [smem:[#allocation2 + $0x8]]
    %v36 = vstv %s35
    %v37 = vadd.f32 %v34, %v36
    %v38 = vmax.f32 %v37, 0.0
    %s39 = sld [smem:[#allocation2 + $0xe]]
    %v40 = vstv %s39
    %v41 = vmul.f32 %v38, %v40
    %s42 = sld [smem:[#allocation2 + $0x26]]
    %v43 = vstv %s42
    %v44 = vadd.f32 %v41, %v43
    %s45 = sld [smem:[#allocation2 + $0xf]]
    %v46 = vstv %s45
    %v47 = vmul.f32 %v38, %v46
    %s48 = sld [smem:[#allocation2 + $0x27]]
    %v49 = vstv %s48
    %v50 = vadd.f32 %v47, %v49
    %s51 = sld [smem:[#allocation2 + $0x10]]
    %v52 = vstv %s51
    %v53 = vmul.f32 %v38, %v52
    %s54 = sld [smem:[#allocation2 + $0x28]]
    %v55 = vstv %s54
    %v56 = vadd.f32 %v53, %v55
    %s57 = sld [smem:[#allocation2 + $0x11]]
    %v58 = vstv %s57
    %v59 = vmul.f32 %v38, %v58
    %s60 = sld [smem:[#allocation2 + $0x29]]
    %v61 = vstv %s60
    %v62 = vadd.f32 %v59, %v61
    %s63 = sld [smem:[#allocation2 + $0x3]]
    %v64 = vstv %s63
    %v65 = vmul.f32 %v31, %v64
    %s66 = sld [smem:[#allocation2 + $0x9]]
    %v67 = vstv %s66
    %v68 = vadd.f32 %v65, %v67
    %v69 = vmax.f32 %v68, 0.0
    %s70 = sld [smem:[#allocation2 + $0x12]]
    %v71 = vstv %s70
    %v72 = vmul.f32 %v69, %v71
    %v73 = vadd.f32 %v44, %v72
    %s74 = sld [smem:[#allocation2 + $0x13]]
    %v75 = vstv %s74
    %v76 = vmul.f32 %v69, %v75
    %v77 = vadd.f32 %v50, %v76
    %s78 = sld [smem:[#allocation2 + $0x14]]
    %v79 = vstv %s78
    %v80 = vmul.f32 %v69, %v79
    %v81 = vadd.f32 %v56, %v80
    %s82 = sld [smem:[#allocation2 + $0x15]]
    %v83 = vstv %s82
    %v84 = vmul.f32 %v69, %v83
    %v85 = vadd.f32 %v62, %v84
    %s86 = sld [smem:[#allocation2 + $0x4]]
    %v87 = vstv %s86
    %v88 = vmul.f32 %v31, %v87
    %s89 = sld [smem:[#allocation2 + $0xa]]
    %v90 = vstv %s89
    %v91 = vadd.f32 %v88, %v90
    %v92 = vmax.f32 %v91, 0.0
    %s93 = sld [smem:[#allocation2 + $0x16]]
    %v94 = vstv %s93
    %v95 = vmul.f32 %v92, %v94
    %v96 = vadd.f32 %v73, %v95
    %s97 = sld [smem:[#allocation2 + $0x17]]
    %v98 = vstv %s97
    %v99 = vmul.f32 %v92, %v98
    %v100 = vadd.f32 %v77, %v99
    %s101 = sld [smem:[#allocation2 + $0x18]]
    %v102 = vstv %s101
    %v103 = vmul.f32 %v92, %v102
    %v104 = vadd.f32 %v81, %v103
    %s105 = sld [smem:[#allocation2 + $0x19]]
    %v106 = vstv %s105
    %v107 = vmul.f32 %v92, %v106
    %v108 = vadd.f32 %v85, %v107
    %s109 = sld [smem:[#allocation2 + $0x5]]
    %v110 = vstv %s109
    %v111 = vmul.f32 %v31, %v110
    %s112 = sld [smem:[#allocation2 + $0xb]]
    %v113 = vstv %s112
    %v114 = vadd.f32 %v111, %v113
    %v115 = vmax.f32 %v114, 0.0
    %s116 = sld [smem:[#allocation2 + $0x1a]]
    %v117 = vstv %s116
    %v118 = vmul.f32 %v115, %v117
    %v119 = vadd.f32 %v96, %v118
    %s120 = sld [smem:[#allocation2 + $0x1b]]
    %v121 = vstv %s120
    %v122 = vmul.f32 %v115, %v121
    %v123 = vadd.f32 %v100, %v122
    %s124 = sld [smem:[#allocation2 + $0x1c]]
    %v125 = vstv %s124
    %v126 = vmul.f32 %v115, %v125
    %v127 = vadd.f32 %v104, %v126
    %s128 = sld [smem:[#allocation2 + $0x1d]]
    %v129 = vstv %s128
    %v130 = vmul.f32 %v115, %v129
    %v131 = vadd.f32 %v108, %v130
    %s132 = sld [smem:[#allocation2 + $0x6]]
    %v133 = vstv %s132
    %v134 = vmul.f32 %v31, %v133
    %s135 = sld [smem:[#allocation2 + $0xc]]
    %v136 = vstv %s135
    %v137 = vadd.f32 %v134, %v136
    %v138 = vmax.f32 %v137, 0.0
    %s139 = sld [smem:[#allocation2 + $0x1e]]
    %v140 = vstv %s139
    %v141 = vmul.f32 %v138, %v140
    %v142 = vadd.f32 %v119, %v141
    %s143 = sld [smem:[#allocation2 + $0x1f]]
    %v144 = vstv %s143
    %v145 = vmul.f32 %v138, %v144
    %v146 = vadd.f32 %v123, %v145
    %s147 = sld [smem:[#allocation2 + $0x20]]
    %v148 = vstv %s147
    %v149 = vmul.f32 %v138, %v148
    %v150 = vadd.f32 %v127, %v149
    %s151 = sld [smem:[#allocation2 + $0x21]]
    %v152 = vstv %s151
    %v153 = vmul.f32 %v138, %v152
    %v154 = vadd.f32 %v131, %v153
    %s155 = sld [smem:[#allocation2 + $0x7]]
    %v156 = vstv %s155
    %v157 = vmul.f32 %v31, %v156
    %s158 = sld [smem:[#allocation2 + $0xd]]
    %v159 = vstv %s158
    %v160 = vadd.f32 %v157, %v159
    %v161 = vmax.f32 %v160, 0.0
    %s162 = sld [smem:[#allocation2 + $0x22]]
    %v163 = vstv %s162
    %v164 = vmul.f32 %v161, %v163
    %v165 = vadd.f32 %v142, %v164
    %s166 = sld [smem:[#allocation2 + $0x23]]
    %v167 = vstv %s166
    %v168 = vmul.f32 %v161, %v167
    %v169 = vadd.f32 %v146, %v168
    %s170 = sld [smem:[#allocation2 + $0x24]]
    %v171 = vstv %s170
    %v172 = vmul.f32 %v161, %v171
    %v173 = vadd.f32 %v150, %v172
    %s174 = sld [smem:[#allocation2 + $0x25]]
    %v175 = vstv %s174
    %v176 = vmul.f32 %v161, %v175
    %v177 = vadd.f32 %v154, %v176
    %178 = vst [vmem:[%s2] sm:$0xff] %v165
    %179 = vst [vmem:[%s2 + $0x8] sm:$0xff] %v169
    %180 = vst [vmem:[%s2 + $0x10] sm:$0xff] %v173
    %181 = vst [vmem:[%s2 + $0x18] sm:$0xff] %v177
    // Predicated region
    $region14: #{_pallas_forward.1} parent=1 // pred_check
      _
    $region15: #{_pallas_forward.1} parent=1 // pred_check_branch
      %183 = sbr.rel (0) target = $region17
    $region16: #{_pallas_forward.1} parent=1 // pred_region
      _
    $region17: #{_pallas_forward.1} parent=1 // pred_fallthru
      _
    // Predicated region
    $region18: #{_pallas_forward.1} parent=1 // pred_check
      _
    $region19: #{_pallas_forward.1} parent=1 // pred_check_branch
      %185 = sbr.rel (0) target = $region21
    $region20: #{_pallas_forward.1} parent=1 // pred_region
      _
    $region21: #{_pallas_forward.1} parent=1 // pred_fallthru
      _
    %186 = vsyncpa [#allocation3], 1

</llo_original>
